<compile_context>
chip_gen: v5e
topology: v5e:2x2
jax: 0.10.0
libtpu: 0.0.40
codegen_flags: <defaults>
</compile_context>

<pallas_src>
import jax
import jax.numpy as jnp
from jax import lax
from jax.experimental import pallas as pl
from jax.experimental.pallas import tpu as pltpu


EPS = 1e-3


def _bn_kernel(x_ref, gamma_ref, beta_ref, out_ref):
    # x_ref:     [N, Cb, HW]  one block of channels, full batch & spatial extent
    # gamma_ref: [Cb, 1]
    # beta_ref:  [Cb, 1]
    x = x_ref[...].astype(jnp.float32)
    n, cb, hw = x.shape
    inv_count = 1.0 / (n * hw)  # block holds ALL of N and HW -> global count

    # Per-channel batch statistics (two-pass / centered for numerical safety).
    s = jnp.sum(x, axis=2, keepdims=True)                     # [N, Cb, 1]
    mean = jnp.sum(s, axis=0, keepdims=True) * inv_count      # [1, Cb, 1]
    centered = x - mean
    sq = jnp.sum(centered * centered, axis=2, keepdims=True)  # [N, Cb, 1]
    var = jnp.sum(sq, axis=0, keepdims=True) * inv_count      # [1, Cb, 1]

    inv_std = lax.rsqrt(var + EPS)                            # [1, Cb, 1]
    gamma = gamma_ref[...].astype(jnp.float32)[None, :, :]    # [1, Cb, 1]
    beta = beta_ref[...].astype(jnp.float32)[None, :, :]      # [1, Cb, 1]

    # Fold mean / inv_std / gamma / beta into one per-channel scale & bias so
    # the full-size apply is just a mul + add.
    scale = gamma * inv_std
    bias = beta - mean * scale
    out_ref[...] = (x * scale + bias).astype(out_ref.dtype)


def _pick_block_c(c, n, hw, itemsize):
    """Channel-block size: multiple of 8 (sublane tile), sized against a
    ~2 MiB per-block VMEM budget so double-buffered input + output stays well
    under the 32 MiB scoped VMEM limit (and v7x's 64 MiB physical VMEM)."""
    if c <= 8:
        return c
    budget_bytes = 2 << 20
    per_channel_bytes = max(1, n * hw * itemsize)
    bc = min(c, budget_bytes // per_channel_bytes)
    bc = max(8, (bc // 8) * 8)
    if bc >= c:
        # Whole tensor fits in one block: split the channels in two so the grid
        # has a "parallel" axis (megacore / v7x dual-TC) and can pipeline.
        half = ((c // 2) // 8) * 8
        bc = half if half >= 8 else c
    return bc


def batchnorm2d(x_nchw, gamma, beta, *, block_c=None):
    """x_nchw: [N, C, H, W]; gamma, beta: [C]. Training-mode BN forward."""
    n, c, h, w = x_nchw.shape
    hw = h * w

    # Free reshapes on the native NCHW layout -- no HBM-level transpose.
    x3 = x_nchw.reshape(n, c, hw)
    g2 = gamma.reshape(c, 1).astype(jnp.float32)
    b2 = beta.reshape(c, 1).astype(jnp.float32)

    if block_c is None:
        block_c = _pick_block_c(c, n, hw, jnp.dtype(x_nchw.dtype).itemsize)

    grid = (pl.cdiv(c, block_c),)

    out3 = pl.pallas_call(
        _bn_kernel,
        out_shape=jax.ShapeDtypeStruct((n, c, hw), x_nchw.dtype),
        grid_spec=pltpu.PrefetchScalarGridSpec(
            num_scalar_prefetch=0,
            grid=grid,
            in_specs=[
                pl.BlockSpec((n, block_c, hw), lambda i: (0, i, 0)),
                pl.BlockSpec((block_c, 1), lambda i: (i, 0)),
                pl.BlockSpec((block_c, 1), lambda i: (i, 0)),
            ],
            out_specs=pl.BlockSpec((n, block_c, hw), lambda i: (0, i, 0)),
        ),
        compiler_params=pltpu.CompilerParams(
            dimension_semantics=("parallel",),
            vmem_limit_bytes=32 * 1024 * 1024,
        ),
    )(x3, g2, b2)

    return out3.reshape(n, c, h, w)


if __name__ == "__main__":
    key = jax.random.PRNGKey(0)
    kx, kg, kb = jax.random.split(key, 3)

    # Shape from the original module: BatchNorm2d(304) on [1, 304, 7, 7].
    N, C, H, W = 1, 304, 7, 7
    x = jax.random.normal(kx, (N, C, H, W), dtype=jnp.float32)
    # Random affine params exercise the scale/bias path (PyTorch default would
    # be ones/zeros).
    gamma = 1.0 + 0.1 * jax.random.normal(kg, (C,), dtype=jnp.float32)
    beta = 0.1 * jax.random.normal(kb, (C,), dtype=jnp.float32)

    out = batchnorm2d(x, gamma, beta)
    out = jax.block_until_ready(out)

    # Reference: training-mode BN with batch statistics (matches PyTorch
    # BatchNorm2d forward in train mode).
    mean = jnp.mean(x, axis=(0, 2, 3), keepdims=True)
    var = jnp.mean((x - mean) ** 2, axis=(0, 2, 3), keepdims=True)
    ref = (x - mean) / jnp.sqrt(var + EPS) * gamma.reshape(1, C, 1, 1) \
        + beta.reshape(1, C, 1, 1)

    assert out.shape == (N, C, H, W)
    err = float(jnp.max(jnp.abs(out - ref)))
    assert err < 1e-4, err

    print("KERNEL_OK")
</pallas_src>

<mosaic_0001>
module attributes {stable_mosaic.version = 11 : i64} {
  func.func @_bn_kernel(%arg0: i32, %arg1: memref<1x152x49xf32, #tpu.memory_space<vmem>>, %arg2: memref<152x1xf32, #tpu.memory_space<vmem>>, %arg3: memref<152x1xf32, #tpu.memory_space<vmem>>, %arg4: memref<1x152x49xf32, #tpu.memory_space<vmem>>) attributes {dimension_semantics = [#tpu.dimension_semantics<parallel>], iteration_bounds = array<i64: 2>, scalar_prefetch = 0 : i64, scratch_operands = 0 : i64, tpu.core_type = #tpu.core_type<tc>, window_params = [{transform_indices = @transform_0, window_bounds = array<i64: 1, 152, 49>}, {transform_indices = @transform_1, window_bounds = array<i64: 152, 1>}, {transform_indices = @transform_2, window_bounds = array<i64: 152, 1>}, {transform_indices = @transform_3, window_bounds = array<i64: 1, 152, 49>}]} {
    %c0 = arith.constant 0 : index
    %c0_0 = arith.constant 0 : index
    %c0_1 = arith.constant 0 : index
    %0 = vector.load %arg1[%c0, %c0_0, %c0_1] : memref<1x152x49xf32, #tpu.memory_space<vmem>>, vector<1x152x49xf32>
    %cst = arith.constant dense<0.000000e+00> : vector<1x152xf32>
    %1 = vector.multi_reduction <add>, %0, %cst [2] : vector<1x152x49xf32> to vector<1x152xf32>
    %2 = vector.shape_cast %1 : vector<1x152xf32> to vector<1x152x1xf32>
    %cst_2 = arith.constant dense<0.000000e+00> : vector<152x1xf32>
    %3 = vector.multi_reduction <add>, %2, %cst_2 [0] : vector<1x152x1xf32> to vector<152x1xf32>
    %4 = vector.shape_cast %3 : vector<152x1xf32> to vector<1x152x1xf32>
    %cst_3 = arith.constant 0.0204081628 : f32
    %5 = vector.broadcast %cst_3 : f32 to vector<1x152x1xf32>
    %6 = arith.mulf %4, %5 : vector<1x152x1xf32>
    %7 = vector.broadcast %6 : vector<1x152x1xf32> to vector<1x152x49xf32>
    %8 = arith.subf %0, %7 : vector<1x152x49xf32>
    %9 = arith.mulf %8, %8 : vector<1x152x49xf32>
    %cst_4 = arith.constant dense<0.000000e+00> : vector<1x152xf32>
    %10 = vector.multi_reduction <add>, %9, %cst_4 [2] : vector<1x152x49xf32> to vector<1x152xf32>
    %11 = vector.shape_cast %10 : vector<1x152xf32> to vector<1x152x1xf32>
    %cst_5 = arith.constant dense<0.000000e+00> : vector<152x1xf32>
    %12 = vector.multi_reduction <add>, %11, %cst_5 [0] : vector<1x152x1xf32> to vector<152x1xf32>
    %13 = vector.shape_cast %12 : vector<152x1xf32> to vector<1x152x1xf32>
    %cst_6 = arith.constant 0.0204081628 : f32
    %14 = vector.broadcast %cst_6 : f32 to vector<1x152x1xf32>
    %15 = arith.mulf %13, %14 : vector<1x152x1xf32>
    %cst_7 = arith.constant 1.000000e-03 : f32
    %16 = vector.broadcast %cst_7 : f32 to vector<1x152x1xf32>
    %17 = arith.addf %15, %16 : vector<1x152x1xf32>
    %18 = math.rsqrt %17 : vector<1x152x1xf32>
    %c0_8 = arith.constant 0 : index
    %c0_9 = arith.constant 0 : index
    %19 = vector.load %arg2[%c0_8, %c0_9] : memref<152x1xf32, #tpu.memory_space<vmem>>, vector<152x1xf32>
    %20 = vector.shape_cast %19 : vector<152x1xf32> to vector<1x152x1xf32>
    %c0_10 = arith.constant 0 : index
    %c0_11 = arith.constant 0 : index
    %21 = vector.load %arg3[%c0_10, %c0_11] : memref<152x1xf32, #tpu.memory_space<vmem>>, vector<152x1xf32>
    %22 = vector.shape_cast %21 : vector<152x1xf32> to vector<1x152x1xf32>
    %23 = arith.mulf %20, %18 : vector<1x152x1xf32>
    %24 = arith.mulf %6, %23 : vector<1x152x1xf32>
    %25 = arith.subf %22, %24 : vector<1x152x1xf32>
    %26 = vector.broadcast %23 : vector<1x152x1xf32> to vector<1x152x49xf32>
    %27 = arith.mulf %0, %26 : vector<1x152x49xf32>
    %28 = vector.broadcast %25 : vector<1x152x1xf32> to vector<1x152x49xf32>
    %29 = arith.addf %27, %28 : vector<1x152x49xf32>
    %c0_12 = arith.constant 0 : index
    %c0_13 = arith.constant 0 : index
    %c0_14 = arith.constant 0 : index
    %30 = vector.load %arg4[%c0_12, %c0_13, %c0_14] : memref<1x152x49xf32, #tpu.memory_space<vmem>>, vector<1x152x49xf32>
    tpu.vector_store %arg4[%c0_12, %c0_13, %c0_14], %29 {strides = array<i32>} : memref<1x152x49xf32, #tpu.memory_space<vmem>>, vector<1x152x49xf32>,
    return
  }
  func.func @transform_0(%arg0: i32) -> (i32, i32, i32) {
    %c0_i32 = arith.constant 0 : i32
    %c0_i32_0 = arith.constant 0 : i32
    %c0_i32_1 = arith.constant 0 : i32
    return %c0_i32, %arg0, %c0_i32_0 : i32, i32, i32
  }
  func.func @transform_1(%arg0: i32) -> (i32, i32) {
    %c0_i32 = arith.constant 0 : i32
    %c0_i32_0 = arith.constant 0 : i32
    return %arg0, %c0_i32 : i32, i32
  }
  func.func @transform_2(%arg0: i32) -> (i32, i32) {
    %c0_i32 = arith.constant 0 : i32
    %c0_i32_0 = arith.constant 0 : i32
    return %arg0, %c0_i32 : i32, i32
  }
  func.func @transform_3(%arg0: i32) -> (i32, i32, i32) {
    %c0_i32 = arith.constant 0 : i32
    %c0_i32_0 = arith.constant 0 : i32
    %c0_i32_1 = arith.constant 0 : i32
    return %c0_i32, %arg0, %c0_i32_0 : i32, i32, i32
  }
}

</mosaic_0001>

<llo_original>
// kernel: tpu_custom_call.1
$region0: #{tpu_custom_call.1}
  #allocation0 [shape = 'u32[]', space=smem, size = 0x4, offset = 0x4, fixed_abs, tag = 'smem constant byte address 0x4 - core index']
  #allocation1 [shape = 'u32[72,128]{1,0:T(1,128)}', space=vmem, size = 0x9000, scoped, tag = 'internal scratch']
  %s0 = inlined_call_operand.vmem [shape: f32[1,304,49], index: 0, kind: input, shape index: {}]
  %s1 = inlined_call_operand.vmem [shape: f32[304,1], index: 1, kind: input, shape index: {}]
  %s2 = inlined_call_operand.vmem [shape: f32[304,1], index: 2, kind: input, shape index: {}]
  %s3 = inlined_call_operand.vmem [shape: f32[1,304,49], index: 3, kind: output, shape index: {}]
  %s4 = sld [smem:[#allocation0]]
  $region45: #{tpu_custom_call.1} parent=0
    _
  %s6 = ssub.s32 1, %s4
  %s7 = scalar_select 0, %s6, %s4
  loop: start=0, step=1, limit=4
  $region2: #{tpu_custom_call.1} parent=0 // loop_pre_header
    _
  $region3: #{tpu_custom_call.1} parent=0 // loop_header
    %s9 = sphi 0, %s13
    %p10 = scmp.ge.s32.totalorder %s9, 4
    %s19 = sphi 0, %s21
    %s22 = sphi 0, %s19
    %s23 = sphi 0, %s22
    %s39 = sphi 0, %s23
    %s45 = sphi 0, %s47
    %s48 = sphi 0, %s45
    %s49 = sphi 0, %s48
    %s65 = sphi 0, %s49
    %s71 = sphi 0, %s73
    %s74 = sphi 0, %s71
    %s75 = sphi 0, %s74
    %s91 = sphi 0, %s75
    %s97 = sphi 0, %s99
    %s100 = sphi 0, %s97
    %s101 = sphi 0, %s100
    %s117 = sphi 0, %s101
  $region4: #{tpu_custom_call.1} parent=0 // loop_header_branch
    %12 = sbr.rel (%p10) target = $region8
  $region5: #{tpu_custom_call.1} parent=0 // loop_body
    %s14 = ssub.s32 %s9, 1
    %s15 = ssub.s32 %s9, 2
    %s16 = sadd.s32 %s9, 1
    %s17 = ssub.s32 %s9, %s16
    %p18 = scmp.eq.s32.totalorder %s17, 0
    %s20 = sadd.s32 %s19, 1
    %s21 = scalar_select %p18, %s19, %s20
    %p24 = pneg %p18
    %p25 = scmp.eq.s32.totalorder %s9, 1
    %p26 = por %p24, %p25
    %p27 = scmp.ne.s32.totalorder %s19, %s22
    %p28 = scmp.eq.s32.totalorder %s9, 0
    %p29 = por %p27, %p28
    %p30 = scmp.ne.s32.totalorder %s19, %s22
    %p31 = scmp.eq.s32.totalorder %s14, 1
    %p32 = por %p30, %p31
    %p33 = scmp.ne.s32.totalorder %s22, %s23
    %p34 = scmp.eq.s32.totalorder %s14, 0
    %p35 = por %p33, %p34
    %p36 = scmp.ne.s32.totalorder %s22, %s23
    %p37 = scmp.eq.s32.totalorder %s15, 1
    %p38 = por %p36, %p37
    %p40 = scmp.ne.s32.totalorder %s23, %s39
    %p41 = scmp.eq.s32.totalorder %s15, 0
    %p42 = por %p40, %p41
    %s43 = ssub.s32 %s9, %s16
    %p44 = scmp.eq.s32.totalorder %s43, 0
    %s46 = sadd.s32 %s45, 1
    %s47 = scalar_select %p44, %s45, %s46
    %p50 = pneg %p44
    %p51 = scmp.eq.s32.totalorder %s9, 1
    %p52 = por %p50, %p51
    %p53 = scmp.ne.s32.totalorder %s45, %s48
    %p54 = scmp.eq.s32.totalorder %s9, 0
    %p55 = por %p53, %p54
    %p56 = scmp.ne.s32.totalorder %s45, %s48
    %p57 = scmp.eq.s32.totalorder %s14, 1
    %p58 = por %p56, %p57
    %p59 = scmp.ne.s32.totalorder %s48, %s49
    %p60 = scmp.eq.s32.totalorder %s14, 0
    %p61 = por %p59, %p60
    %p62 = scmp.ne.s32.totalorder %s48, %s49
    %p63 = scmp.eq.s32.totalorder %s15, 1
    %p64 = por %p62, %p63
    %p66 = scmp.ne.s32.totalorder %s49, %s65
    %p67 = scmp.eq.s32.totalorder %s15, 0
    %p68 = por %p66, %p67
    %s69 = ssub.s32 %s9, %s16
    %p70 = scmp.eq.s32.totalorder %s69, 0
    %s72 = sadd.s32 %s71, 1
    %s73 = scalar_select %p70, %s71, %s72
    %p76 = pneg %p70
    %p77 = scmp.eq.s32.totalorder %s9, 1
    %p78 = por %p76, %p77
    %p79 = scmp.ne.s32.totalorder %s71, %s74
    %p80 = scmp.eq.s32.totalorder %s9, 0
    %p81 = por %p79, %p80
    %p82 = scmp.ne.s32.totalorder %s71, %s74
    %p83 = scmp.eq.s32.totalorder %s14, 1
    %p84 = por %p82, %p83
    %p85 = scmp.ne.s32.totalorder %s74, %s75
    %p86 = scmp.eq.s32.totalorder %s14, 0
    %p87 = por %p85, %p86
    %p88 = scmp.ne.s32.totalorder %s74, %s75
    %p89 = scmp.eq.s32.totalorder %s15, 1
    %p90 = por %p88, %p89
    %p92 = scmp.ne.s32.totalorder %s75, %s91
    %p93 = scmp.eq.s32.totalorder %s15, 0
    %p94 = por %p92, %p93
    %s95 = ssub.s32 %s9, %s16
    %p96 = scmp.eq.s32.totalorder %s95, 0
    %s98 = sadd.s32 %s97, 1
    %s99 = scalar_select %p96, %s97, %s98
    %p102 = pneg %p96
    %p103 = scmp.eq.s32.totalorder %s9, 1
    %p104 = por %p102, %p103
    %p105 = scmp.ne.s32.totalorder %s97, %s100
    %p106 = scmp.eq.s32.totalorder %s9, 0
    %p107 = por %p105, %p106
    %p108 = scmp.ne.s32.totalorder %s97, %s100
    %p109 = scmp.eq.s32.totalorder %s14, 1
    %p110 = por %p108, %p109
    %p111 = scmp.ne.s32.totalorder %s100, %s101
    %p112 = scmp.eq.s32.totalorder %s14, 0
    %p113 = por %p111, %p112
    %p114 = scmp.ne.s32.totalorder %s100, %s101
    %p115 = scmp.eq.s32.totalorder %s15, 1
    %p116 = por %p114, %p115
    %p118 = scmp.ne.s32.totalorder %s101, %s117
    %p119 = scmp.eq.s32.totalorder %s15, 0
    %p120 = por %p118, %p119
    %p121 = scmp.le.s32.totalorder 1, %s9
    %p122 = scmp.lt.s32.totalorder %s9, 3
    %p123 = pnand %p121, %p122
    %p124 = pneg %p123
    // Predicated region
    $region9: #{tpu_custom_call.1} parent=5 // pred_check
      _
    $region10: #{tpu_custom_call.1} parent=5 // pred_check_branch
      %126 = sbr.rel (%p123) target = $region12
    $region11: #{tpu_custom_call.1} parent=5 // pred_region
      %s127 = ssub.s32 %s9, 1
    $region12: #{tpu_custom_call.1} parent=5 // pred_fallthru
      _
    %p128 = scmp.lt.s32.totalorder %s9, 2
    // Predicated region
    $region13: #{tpu_custom_call.1} parent=5 // pred_check
      %p129 = pneg %p128
    $region14: #{tpu_custom_call.1} parent=5 // pred_check_branch
      %131 = sbr.rel (%p129) target = $region16
    $region15: #{tpu_custom_call.1} parent=5 // pred_region
      // Predicated region
      $region17: #{tpu_custom_call.1} parent=15 // pred_check
        %p132 = pneg %p29
      $region18: #{tpu_custom_call.1} parent=15 // pred_check_branch
        %134 = sbr.rel (%p132) target = $region20
      $region19: #{tpu_custom_call.1} parent=15 // pred_region
        %s135 = smul.u32 19, %s9
        %p136 = scmp.lt.s32.totalorder %s135, 37
        %s137 = scalar_select %p136, %s135, 37
        %s138 = smul.addr %s137, 8
        %s139 = scalar_lea.vmem %s0, %s138
        %s140 = smul.u32 19, %s9
      $region20: #{tpu_custom_call.1} parent=15 // pred_fallthru
        _
      // Predicated region
      $region21: #{tpu_custom_call.1} parent=15 // pred_check
        %p141 = pneg %p55
      $region22: #{tpu_custom_call.1} parent=15 // pred_check_branch
        %143 = sbr.rel (%p141) target = $region24
      $region23: #{tpu_custom_call.1} parent=15 // pred_region
        %s144 = smul.u32 19, %s9
        %p145 = scmp.lt.s32.totalorder %s144, 37
        %s146 = scalar_select %p145, %s144, 37
        %s147 = smul.addr %s146, 8
        %s148 = scalar_lea.vmem %s1, %s147
        %s149 = smul.u32 19, %s9
      $region24: #{tpu_custom_call.1} parent=15 // pred_fallthru
        _
      // Predicated region
      $region25: #{tpu_custom_call.1} parent=15 // pred_check
        %p150 = pneg %p81
      $region26: #{tpu_custom_call.1} parent=15 // pred_check_branch
        %152 = sbr.rel (%p150) target = $region28
      $region27: #{tpu_custom_call.1} parent=15 // pred_region
        %s153 = smul.u32 19, %s9
        %p154 = scmp.lt.s32.totalorder %s153, 37
        %s155 = scalar_select %p154, %s153, 37
        %s156 = smul.addr %s155, 8
        %s157 = scalar_lea.vmem %s2, %s156
        %s158 = smul.u32 19, %s9
      $region28: #{tpu_custom_call.1} parent=15 // pred_fallthru
        _
    $region16: #{tpu_custom_call.1} parent=5 // pred_fallthru
      _
    %p159 = scmp.le.s32.totalorder 1, %s9
    %p160 = scmp.lt.s32.totalorder %s9, 3
    %p161 = pnand %p159, %p160
    %p162 = pneg %p161
    // Predicated region
    $region29: #{tpu_custom_call.1} parent=5 // pred_check
      _
    $region30: #{tpu_custom_call.1} parent=5 // pred_check_branch
      %164 = sbr.rel (%p161) target = $region32
    $region31: #{tpu_custom_call.1} parent=5 // pred_region
      %s165 = ssub.s32 %s9, 1
      %s166 = smul.u32 19, %s14
      %p167 = scmp.lt.s32.totalorder %s166, 37
      %s168 = scalar_select %p167, %s166, 37
      %s169 = smul.addr %s168, 8
      %s170 = scalar_lea.vmem %s0, %s169
      %p171 = pneg %p35
      %p172 = pneg %p32
      %s173 = smul.u32 19, %s14
      %p174 = scmp.lt.s32.totalorder %s173, 37
      %s175 = scalar_select %p174, %s173, 37
      %s176 = smul.addr %s175, 8
      %s177 = scalar_lea.vmem %s1, %s176
      %p178 = pneg %p61
      %p179 = pneg %p58
      %s180 = smul.u32 19, %s14
      %p181 = scmp.lt.s32.totalorder %s180, 37
      %s182 = scalar_select %p181, %s180, 37
      %s183 = smul.addr %s182, 8
      %s184 = scalar_lea.vmem %s2, %s183
      %p185 = pneg %p87
      %p186 = pneg %p84
      %p187 = pneg %p113
      %p188 = pneg %p110
      %s189 = smul.u32 19, %s14
      %p190 = scmp.lt.s32.totalorder %s189, 37
      %s191 = scalar_select %p190, %s189, 37
      %s192 = smul.addr %s191, 8
      %s193 = scalar_lea.vmem %s3, %s192
      %s194 = smul.u32 19, %s14
      %p195 = scmp.lt.s32.totalorder %s194, 37
      %s196 = scalar_select %p195, %s194, 37
      %s197 = smul.addr %s196, 8
      %s198 = scalar_lea.vmem %s0, %s197
      %s199 = smul.u32 19, %s14
      %s200 = smul.u32 19, %s14
      %p201 = scmp.lt.s32.totalorder %s200, 37
      %s202 = scalar_select %p201, %s200, 37
      %s203 = smul.addr %s202, 8
      %s204 = scalar_lea.vmem %s1, %s203
      %s205 = smul.u32 19, %s14
      %s206 = smul.u32 19, %s14
      %p207 = scmp.lt.s32.totalorder %s206, 37
      %s208 = scalar_select %p207, %s206, 37
      %s209 = smul.addr %s208, 8
      %s210 = scalar_lea.vmem %s2, %s209
      %s211 = smul.u32 19, %s14
      %s212 = smul.u32 19, %s14
      %p213 = scmp.lt.s32.totalorder %s212, 37
      %s214 = scalar_select %p213, %s212, 37
      %s215 = smul.addr %s214, 8
      %s216 = scalar_lea.vmem %s3, %s215
      %s217 = smul.u32 19, %s14
      %v218 = vld [vmem:[%s198] sm:$0xff]
      %v219 = vld [vmem:[%s198 + $0x8] sm:$0xff]
      %v220 = vld [vmem:[%s198 + $0x10] sm:$0xff]
      %v221 = vld [vmem:[%s198 + $0x18] sm:$0xff]
      %v222 = vld [vmem:[%s198 + $0x20] sm:$0xff]
      %v223 = vld [vmem:[%s198 + $0x28] sm:$0xff]
      %v224 = vld [vmem:[%s198 + $0x30] sm:$0xff]
      %v225 = vld [vmem:[%s198 + $0x38] sm:$0xff]
      %v226 = vld [vmem:[%s198 + $0x40] sm:$0xff]
      %v227 = vld [vmem:[%s198 + $0x48] sm:$0xff]
      %v228 = vld [vmem:[%s198 + $0x50] sm:$0xff]
      %v229 = vld [vmem:[%s198 + $0x58] sm:$0xff]
      %v230 = vld [vmem:[%s198 + $0x60] sm:$0xff]
      %v231 = vld [vmem:[%s198 + $0x68] sm:$0xff]
      %v232 = vld [vmem:[%s198 + $0x70] sm:$0xff]
      %v233 = vld [vmem:[%s198 + $0x78] sm:$0xff]
      %v234 = vld [vmem:[%s198 + $0x80] sm:$0xff]
      %v235 = vld [vmem:[%s198 + $0x88] sm:$0xff]
      %v236 = vld [vmem:[%s198 + $0x90] sm:$0xff]
      %vm237 = vcmask 400384
      %v238 = vsel %vm237, %v218, 0.0
      %239 = vadd.xlane.f32.xlu0 %v238
      %v240 = vpop.xlane.xlu0 %239
      %v241 = vsel %vm237, %v219, 0.0
      %242 = vadd.xlane.f32.xlu0 %v241
      %v243 = vpop.xlane.xlu0 %242
      %v244 = vsel %vm237, %v220, 0.0
      %245 = vadd.xlane.f32.xlu0 %v244
      %v246 = vpop.xlane.xlu0 %245
      %v247 = vsel %vm237, %v221, 0.0
      %248 = vadd.xlane.f32.xlu0 %v247
      %v249 = vpop.xlane.xlu0 %248
      %v250 = vsel %vm237, %v222, 0.0
      %251 = vadd.xlane.f32.xlu0 %v250
      %v252 = vpop.xlane.xlu0 %251
      %v253 = vsel %vm237, %v223, 0.0
      %254 = vadd.xlane.f32.xlu0 %v253
      %v255 = vpop.xlane.xlu0 %254
      %v256 = vsel %vm237, %v224, 0.0
      %257 = vadd.xlane.f32.xlu0 %v256
      %v258 = vpop.xlane.xlu0 %257
      %v259 = vsel %vm237, %v225, 0.0
      %260 = vadd.xlane.f32.xlu0 %v259
      %v261 = vpop.xlane.xlu0 %260
      %v262 = vsel %vm237, %v226, 0.0
      %263 = vadd.xlane.f32.xlu0 %v262
      %v264 = vpop.xlane.xlu0 %263
      %v265 = vsel %vm237, %v227, 0.0
      %266 = vadd.xlane.f32.xlu0 %v265
      %v267 = vpop.xlane.xlu0 %266
      %v268 = vsel %vm237, %v228, 0.0
      %269 = vadd.xlane.f32.xlu0 %v268
      %v270 = vpop.xlane.xlu0 %269
      %v271 = vsel %vm237, %v229, 0.0
      %272 = vadd.xlane.f32.xlu0 %v271
      %v273 = vpop.xlane.xlu0 %272
      %v274 = vsel %vm237, %v230, 0.0
      %275 = vadd.xlane.f32.xlu0 %v274
      %v276 = vpop.xlane.xlu0 %275
      %v277 = vsel %vm237, %v231, 0.0
      %278 = vadd.xlane.f32.xlu0 %v277
      %v279 = vpop.xlane.xlu0 %278
      %v280 = vsel %vm237, %v232, 0.0
      %281 = vadd.xlane.f32.xlu0 %v280
      %v282 = vpop.xlane.xlu0 %281
      %v283 = vsel %vm237, %v233, 0.0
      %284 = vadd.xlane.f32.xlu0 %v283
      %v285 = vpop.xlane.xlu0 %284
      %v286 = vsel %vm237, %v234, 0.0
      %287 = vadd.xlane.f32.xlu0 %v286
      %v288 = vpop.xlane.xlu0 %287
      %v289 = vsel %vm237, %v235, 0.0
      %290 = vadd.xlane.f32.xlu0 %v289
      %v291 = vpop.xlane.xlu0 %290
      %v292 = vsel %vm237, %v236, 0.0
      %293 = vadd.xlane.f32.xlu0 %v292
      %v294 = vpop.xlane.xlu0 %293
      %v295 = vadd.f32 %v240, 0.0
      %v296 = vadd.f32 %v243, 0.0
      %v297 = vadd.f32 %v246, 0.0
      %v298 = vadd.f32 %v249, 0.0
      %v299 = vadd.f32 %v252, 0.0
      %v300 = vadd.f32 %v255, 0.0
      %v301 = vadd.f32 %v258, 0.0
      %v302 = vadd.f32 %v261, 0.0
      %v303 = vadd.f32 %v264, 0.0
      %v304 = vadd.f32 %v267, 0.0
      %v305 = vadd.f32 %v270, 0.0
      %v306 = vadd.f32 %v273, 0.0
      %v307 = vadd.f32 %v276, 0.0
      %v308 = vadd.f32 %v279, 0.0
      %v309 = vadd.f32 %v282, 0.0
      %v310 = vadd.f32 %v285, 0.0
      %v311 = vadd.f32 %v288, 0.0
      %v312 = vadd.f32 %v291, 0.0
      %v313 = vadd.f32 %v294, 0.0
      %v314 = vmul.f32 %v295, 0.020408163
      %v315 = vmul.f32 %v296, 0.020408163
      %v316 = vmul.f32 %v297, 0.020408163
      %v317 = vmul.f32 %v298, 0.020408163
      %v318 = vmul.f32 %v299, 0.020408163
      %v319 = vmul.f32 %v300, 0.020408163
      %v320 = vmul.f32 %v301, 0.020408163
      %v321 = vmul.f32 %v302, 0.020408163
      %v322 = vmul.f32 %v303, 0.020408163
      %v323 = vmul.f32 %v304, 0.020408163
      %v324 = vmul.f32 %v305, 0.020408163
      %v325 = vmul.f32 %v306, 0.020408163
      %v326 = vmul.f32 %v307, 0.020408163
      %v327 = vmul.f32 %v308, 0.020408163
      %v328 = vmul.f32 %v309, 0.020408163
      %v329 = vmul.f32 %v310, 0.020408163
      %v330 = vmul.f32 %v311, 0.020408163
      %v331 = vmul.f32 %v312, 0.020408163
      %v332 = vmul.f32 %v313, 0.020408163
      %v333 = vsub.f32 %v218, %v314
      %v334 = vsub.f32 %v219, %v315
      %v335 = vsub.f32 %v220, %v316
      %v336 = vsub.f32 %v221, %v317
      %v337 = vsub.f32 %v222, %v318
      %v338 = vsub.f32 %v223, %v319
      %v339 = vsub.f32 %v224, %v320
      %v340 = vsub.f32 %v225, %v321
      %v341 = vsub.f32 %v226, %v322
      %v342 = vsub.f32 %v227, %v323
      %v343 = vsub.f32 %v228, %v324
      %v344 = vsub.f32 %v229, %v325
      %v345 = vsub.f32 %v230, %v326
      %v346 = vsub.f32 %v231, %v327
      %v347 = vsub.f32 %v232, %v328
      %v348 = vsub.f32 %v233, %v329
      %v349 = vsub.f32 %v234, %v330
      %v350 = vsub.f32 %v235, %v331
      %v351 = vsub.f32 %v236, %v332
      %v352 = vmul.f32 %v333, %v333
      %v353 = vmul.f32 %v334, %v334
      %v354 = vmul.f32 %v335, %v335
      %v355 = vmul.f32 %v336, %v336
      %v356 = vmul.f32 %v337, %v337
      %v357 = vmul.f32 %v338, %v338
      %v358 = vmul.f32 %v339, %v339
      %v359 = vmul.f32 %v340, %v340
      %v360 = vmul.f32 %v341, %v341
      %v361 = vmul.f32 %v342, %v342
      %v362 = vmul.f32 %v343, %v343
      %v363 = vmul.f32 %v344, %v344
      %v364 = vmul.f32 %v345, %v345
      %v365 = vmul.f32 %v346, %v346
      %v366 = vmul.f32 %v347, %v347
      %v367 = vmul.f32 %v348, %v348
      %v368 = vmul.f32 %v349, %v349
      %v369 = vmul.f32 %v350, %v350
      %v370 = vmul.f32 %v351, %v351
      %v371 = vsel %vm237, %v352, 0.0
      %372 = vadd.xlane.f32.xlu0 %v371
      %v373 = vpop.xlane.xlu0 %372
      %v374 = vsel %vm237, %v353, 0.0
      %375 = vadd.xlane.f32.xlu0 %v374
      %v376 = vpop.xlane.xlu0 %375
      %v377 = vsel %vm237, %v354, 0.0
      %378 = vadd.xlane.f32.xlu0 %v377
      %v379 = vpop.xlane.xlu0 %378
      %v380 = vsel %vm237, %v355, 0.0
      %381 = vadd.xlane.f32.xlu0 %v380
      %v382 = vpop.xlane.xlu0 %381
      %v383 = vsel %vm237, %v356, 0.0
      %384 = vadd.xlane.f32.xlu0 %v383
      %v385 = vpop.xlane.xlu0 %384
      %v386 = vsel %vm237, %v357, 0.0
      %387 = vadd.xlane.f32.xlu0 %v386
      %v388 = vpop.xlane.xlu0 %387
      %v389 = vsel %vm237, %v358, 0.0
      %390 = vadd.xlane.f32.xlu0 %v389
      %v391 = vpop.xlane.xlu0 %390
      %v392 = vsel %vm237, %v359, 0.0
      %393 = vadd.xlane.f32.xlu0 %v392
      %v394 = vpop.xlane.xlu0 %393
      %v395 = vsel %vm237, %v360, 0.0
      %396 = vadd.xlane.f32.xlu0 %v395
      %v397 = vpop.xlane.xlu0 %396
      %v398 = vsel %vm237, %v361, 0.0
      %399 = vadd.xlane.f32.xlu0 %v398
      %v400 = vpop.xlane.xlu0 %399
      %v401 = vsel %vm237, %v362, 0.0
      %402 = vadd.xlane.f32.xlu0 %v401
      %v403 = vpop.xlane.xlu0 %402
      %v404 = vsel %vm237, %v363, 0.0
      %405 = vadd.xlane.f32.xlu0 %v404
      %v406 = vpop.xlane.xlu0 %405
      %v407 = vsel %vm237, %v364, 0.0
      %408 = vadd.xlane.f32.xlu0 %v407
      %v409 = vpop.xlane.xlu0 %408
      %v410 = vsel %vm237, %v365, 0.0
      %411 = vadd.xlane.f32.xlu0 %v410
      %v412 = vpop.xlane.xlu0 %411
      %v413 = vsel %vm237, %v366, 0.0
      %414 = vadd.xlane.f32.xlu0 %v413
      %v415 = vpop.xlane.xlu0 %414
      %v416 = vsel %vm237, %v367, 0.0
      %417 = vadd.xlane.f32.xlu0 %v416
      %v418 = vpop.xlane.xlu0 %417
      %v419 = vsel %vm237, %v368, 0.0
      %420 = vadd.xlane.f32.xlu0 %v419
      %v421 = vpop.xlane.xlu0 %420
      %v422 = vsel %vm237, %v369, 0.0
      %423 = vadd.xlane.f32.xlu0 %v422
      %v424 = vpop.xlane.xlu0 %423
      %v425 = vsel %vm237, %v370, 0.0
      %426 = vadd.xlane.f32.xlu0 %v425
      %v427 = vpop.xlane.xlu0 %426
      %v428 = vadd.f32 %v373, 0.0
      %v429 = vadd.f32 %v376, 0.0
      %v430 = vadd.f32 %v379, 0.0
      %v431 = vadd.f32 %v382, 0.0
      %v432 = vadd.f32 %v385, 0.0
      %v433 = vadd.f32 %v388, 0.0
      %v434 = vadd.f32 %v391, 0.0
      %v435 = vadd.f32 %v394, 0.0
      %v436 = vadd.f32 %v397, 0.0
      %v437 = vadd.f32 %v400, 0.0
      %v438 = vadd.f32 %v403, 0.0
      %v439 = vadd.f32 %v406, 0.0
      %v440 = vadd.f32 %v409, 0.0
      %v441 = vadd.f32 %v412, 0.0
      %v442 = vadd.f32 %v415, 0.0
      %v443 = vadd.f32 %v418, 0.0
      %v444 = vadd.f32 %v421, 0.0
      %v445 = vadd.f32 %v424, 0.0
      %v446 = vadd.f32 %v427, 0.0
      %v447 = vmul.f32 %v428, 0.020408163
      %v448 = vmul.f32 %v429, 0.020408163
      %v449 = vmul.f32 %v430, 0.020408163
      %v450 = vmul.f32 %v431, 0.020408163
      %v451 = vmul.f32 %v432, 0.020408163
      %v452 = vmul.f32 %v433, 0.020408163
      %v453 = vmul.f32 %v434, 0.020408163
      %v454 = vmul.f32 %v435, 0.020408163
      %v455 = vmul.f32 %v436, 0.020408163
      %v456 = vmul.f32 %v437, 0.020408163
      %v457 = vmul.f32 %v438, 0.020408163
      %v458 = vmul.f32 %v439, 0.020408163
      %v459 = vmul.f32 %v440, 0.020408163
      %v460 = vmul.f32 %v441, 0.020408163
      %v461 = vmul.f32 %v442, 0.020408163
      %v462 = vmul.f32 %v443, 0.020408163
      %v463 = vmul.f32 %v444, 0.020408163
      %v464 = vmul.f32 %v445, 0.020408163
      %v465 = vmul.f32 %v446, 0.020408163
      %v466 = vadd.f32 %v447, 0.001
      %v467 = vadd.f32 %v448, 0.001
      %v468 = vadd.f32 %v449, 0.001
      %v469 = vadd.f32 %v450, 0.001
      %v470 = vadd.f32 %v451, 0.001
      %v471 = vadd.f32 %v452, 0.001
      %v472 = vadd.f32 %v453, 0.001
      %v473 = vadd.f32 %v454, 0.001
      %v474 = vadd.f32 %v455, 0.001
      %v475 = vadd.f32 %v456, 0.001
      %v476 = vadd.f32 %v457, 0.001
      %v477 = vadd.f32 %v458, 0.001
      %v478 = vadd.f32 %v459, 0.001
      %v479 = vadd.f32 %v460, 0.001
      %v480 = vadd.f32 %v461, 0.001
      %v481 = vadd.f32 %v462, 0.001
      %v482 = vadd.f32 %v463, 0.001
      %v483 = vadd.f32 %v464, 0.001
      %v484 = vadd.f32 %v465, 0.001
      %v485 = vrsqrt.pop %v466
      %v486 = vmul.f32 %v485, %v466
      %v487 = vmul.f32 %v486, %v485
      %v488 = vmul.f32 0.5, %v487
      %v489 = vsub.f32 1.5, %v488
      %v490 = vmul.f32 %v485, %v489
      %vm491 = vweird.f32 %v466
      %vm492 = vweird.f32 %v485
      %vm493 = vmor %vm491, %vm492
      %v494 = vsel %vm493, %v485, %v490
      %v495 = vrsqrt.pop %v467
      %v496 = vmul.f32 %v495, %v467
      %v497 = vmul.f32 %v496, %v495
      %v498 = vmul.f32 0.5, %v497
      %v499 = vsub.f32 1.5, %v498
      %v500 = vmul.f32 %v495, %v499
      %vm501 = vweird.f32 %v467
      %vm502 = vweird.f32 %v495
      %vm503 = vmor %vm501, %vm502
      %v504 = vsel %vm503, %v495, %v500
      %v505 = vrsqrt.pop %v468
      %v506 = vmul.f32 %v505, %v468
      %v507 = vmul.f32 %v506, %v505
      %v508 = vmul.f32 0.5, %v507
      %v509 = vsub.f32 1.5, %v508
      %v510 = vmul.f32 %v505, %v509
      %vm511 = vweird.f32 %v468
      %vm512 = vweird.f32 %v505
      %vm513 = vmor %vm511, %vm512
      %v514 = vsel %vm513, %v505, %v510
      %v515 = vrsqrt.pop %v469
      %v516 = vmul.f32 %v515, %v469
      %v517 = vmul.f32 %v516, %v515
      %v518 = vmul.f32 0.5, %v517
      %v519 = vsub.f32 1.5, %v518
      %v520 = vmul.f32 %v515, %v519
      %vm521 = vweird.f32 %v469
      %vm522 = vweird.f32 %v515
      %vm523 = vmor %vm521, %vm522
      %v524 = vsel %vm523, %v515, %v520
      %v525 = vrsqrt.pop %v470
      %v526 = vmul.f32 %v525, %v470
      %v527 = vmul.f32 %v526, %v525
      %v528 = vmul.f32 0.5, %v527
      %v529 = vsub.f32 1.5, %v528
      %v530 = vmul.f32 %v525, %v529
      %vm531 = vweird.f32 %v470
      %vm532 = vweird.f32 %v525
      %vm533 = vmor %vm531, %vm532
      %v534 = vsel %vm533, %v525, %v530
      %v535 = vrsqrt.pop %v471
      %v536 = vmul.f32 %v535, %v471
      %v537 = vmul.f32 %v536, %v535
      %v538 = vmul.f32 0.5, %v537
      %v539 = vsub.f32 1.5, %v538
      %v540 = vmul.f32 %v535, %v539
      %vm541 = vweird.f32 %v471
      %vm542 = vweird.f32 %v535
      %vm543 = vmor %vm541, %vm542
      %v544 = vsel %vm543, %v535, %v540
      %v545 = vrsqrt.pop %v472
      %v546 = vmul.f32 %v545, %v472
      %v547 = vmul.f32 %v546, %v545
      %v548 = vmul.f32 0.5, %v547
      %v549 = vsub.f32 1.5, %v548
      %v550 = vmul.f32 %v545, %v549
      %vm551 = vweird.f32 %v472
      %vm552 = vweird.f32 %v545
      %vm553 = vmor %vm551, %vm552
      %v554 = vsel %vm553, %v545, %v550
      %v555 = vrsqrt.pop %v473
      %v556 = vmul.f32 %v555, %v473
      %v557 = vmul.f32 %v556, %v555
      %v558 = vmul.f32 0.5, %v557
      %v559 = vsub.f32 1.5, %v558
      %v560 = vmul.f32 %v555, %v559
      %vm561 = vweird.f32 %v473
      %vm562 = vweird.f32 %v555
      %vm563 = vmor %vm561, %vm562
      %v564 = vsel %vm563, %v555, %v560
      %v565 = vrsqrt.pop %v474
      %v566 = vmul.f32 %v565, %v474
      %v567 = vmul.f32 %v566, %v565
      %v568 = vmul.f32 0.5, %v567
      %v569 = vsub.f32 1.5, %v568
      %v570 = vmul.f32 %v565, %v569
      %vm571 = vweird.f32 %v474
      %vm572 = vweird.f32 %v565
      %vm573 = vmor %vm571, %vm572
      %v574 = vsel %vm573, %v565, %v570
      %v575 = vrsqrt.pop %v475
      %v576 = vmul.f32 %v575, %v475
      %v577 = vmul.f32 %v576, %v575
      %v578 = vmul.f32 0.5, %v577
      %v579 = vsub.f32 1.5, %v578
      %v580 = vmul.f32 %v575, %v579
      %vm581 = vweird.f32 %v475
      %vm582 = vweird.f32 %v575
      %vm583 = vmor %vm581, %vm582
      %v584 = vsel %vm583, %v575, %v580
      %v585 = vrsqrt.pop %v476
      %v586 = vmul.f32 %v585, %v476
      %v587 = vmul.f32 %v586, %v585
      %v588 = vmul.f32 0.5, %v587
      %v589 = vsub.f32 1.5, %v588
      %v590 = vmul.f32 %v585, %v589
      %vm591 = vweird.f32 %v476
      %vm592 = vweird.f32 %v585
      %vm593 = vmor %vm591, %vm592
      %v594 = vsel %vm593, %v585, %v590
      %v595 = vrsqrt.pop %v477
      %v596 = vmul.f32 %v595, %v477
      %v597 = vmul.f32 %v596, %v595
      %v598 = vmul.f32 0.5, %v597
      %v599 = vsub.f32 1.5, %v598
      %v600 = vmul.f32 %v595, %v599
      %vm601 = vweird.f32 %v477
      %vm602 = vweird.f32 %v595
      %vm603 = vmor %vm601, %vm602
      %v604 = vsel %vm603, %v595, %v600
      %v605 = vrsqrt.pop %v478
      %v606 = vmul.f32 %v605, %v478
      %v607 = vmul.f32 %v606, %v605
      %v608 = vmul.f32 0.5, %v607
      %v609 = vsub.f32 1.5, %v608
      %v610 = vmul.f32 %v605, %v609
      %vm611 = vweird.f32 %v478
      %vm612 = vweird.f32 %v605
      %vm613 = vmor %vm611, %vm612
      %v614 = vsel %vm613, %v605, %v610
      %v615 = vrsqrt.pop %v479
      %v616 = vmul.f32 %v615, %v479
      %v617 = vmul.f32 %v616, %v615
      %v618 = vmul.f32 0.5, %v617
      %v619 = vsub.f32 1.5, %v618
      %v620 = vmul.f32 %v615, %v619
      %vm621 = vweird.f32 %v479
      %vm622 = vweird.f32 %v615
      %vm623 = vmor %vm621, %vm622
      %v624 = vsel %vm623, %v615, %v620
      %v625 = vrsqrt.pop %v480
      %v626 = vmul.f32 %v625, %v480
      %v627 = vmul.f32 %v626, %v625
      %v628 = vmul.f32 0.5, %v627
      %v629 = vsub.f32 1.5, %v628
      %v630 = vmul.f32 %v625, %v629
      %vm631 = vweird.f32 %v480
      %vm632 = vweird.f32 %v625
      %vm633 = vmor %vm631, %vm632
      %v634 = vsel %vm633, %v625, %v630
      %v635 = vrsqrt.pop %v481
      %v636 = vmul.f32 %v635, %v481
      %v637 = vmul.f32 %v636, %v635
      %v638 = vmul.f32 0.5, %v637
      %v639 = vsub.f32 1.5, %v638
      %v640 = vmul.f32 %v635, %v639
      %vm641 = vweird.f32 %v481
      %vm642 = vweird.f32 %v635
      %vm643 = vmor %vm641, %vm642
      %v644 = vsel %vm643, %v635, %v640
      %v645 = vrsqrt.pop %v482
      %v646 = vmul.f32 %v645, %v482
      %v647 = vmul.f32 %v646, %v645
      %v648 = vmul.f32 0.5, %v647
      %v649 = vsub.f32 1.5, %v648
      %v650 = vmul.f32 %v645, %v649
      %vm651 = vweird.f32 %v482
      %vm652 = vweird.f32 %v645
      %vm653 = vmor %vm651, %vm652
      %v654 = vsel %vm653, %v645, %v650
      %v655 = vrsqrt.pop %v483
      %v656 = vmul.f32 %v655, %v483
      %v657 = vmul.f32 %v656, %v655
      %v658 = vmul.f32 0.5, %v657
      %v659 = vsub.f32 1.5, %v658
      %v660 = vmul.f32 %v655, %v659
      %vm661 = vweird.f32 %v483
      %vm662 = vweird.f32 %v655
      %vm663 = vmor %vm661, %vm662
      %v664 = vsel %vm663, %v655, %v660
      %v665 = vrsqrt.pop %v484
      %v666 = vmul.f32 %v665, %v484
      %v667 = vmul.f32 %v666, %v665
      %v668 = vmul.f32 0.5, %v667
      %v669 = vsub.f32 1.5, %v668
      %v670 = vmul.f32 %v665, %v669
      %vm671 = vweird.f32 %v484
      %vm672 = vweird.f32 %v665
      %vm673 = vmor %vm671, %vm672
      %v674 = vsel %vm673, %v665, %v670
      %v675 = vld [vmem:[%s204] sm:$0xff]
      %v676 = vld [vmem:[%s204 + $0x8] sm:$0xff]
      %v677 = vld [vmem:[%s204 + $0x10] sm:$0xff]
      %v678 = vld [vmem:[%s204 + $0x18] sm:$0xff]
      %v679 = vld [vmem:[%s204 + $0x20] sm:$0xff]
      %v680 = vld [vmem:[%s204 + $0x28] sm:$0xff]
      %v681 = vld [vmem:[%s204 + $0x30] sm:$0xff]
      %v682 = vld [vmem:[%s204 + $0x38] sm:$0xff]
      %v683 = vld [vmem:[%s204 + $0x40] sm:$0xff]
      %v684 = vld [vmem:[%s204 + $0x48] sm:$0xff]
      %v685 = vld [vmem:[%s204 + $0x50] sm:$0xff]
      %v686 = vld [vmem:[%s204 + $0x58] sm:$0xff]
      %v687 = vld [vmem:[%s204 + $0x60] sm:$0xff]
      %v688 = vld [vmem:[%s204 + $0x68] sm:$0xff]
      %v689 = vld [vmem:[%s204 + $0x70] sm:$0xff]
      %v690 = vld [vmem:[%s204 + $0x78] sm:$0xff]
      %v691 = vld [vmem:[%s204 + $0x80] sm:$0xff]
      %v692 = vld [vmem:[%s204 + $0x88] sm:$0xff]
      %v693 = vld [vmem:[%s204 + $0x90] sm:$0xff]
      %v694 = vld [vmem:[%s210] sm:$0xff]
      %v695 = vld [vmem:[%s210 + $0x8] sm:$0xff]
      %v696 = vld [vmem:[%s210 + $0x10] sm:$0xff]
      %v697 = vld [vmem:[%s210 + $0x18] sm:$0xff]
      %v698 = vld [vmem:[%s210 + $0x20] sm:$0xff]
      %v699 = vld [vmem:[%s210 + $0x28] sm:$0xff]
      %v700 = vld [vmem:[%s210 + $0x30] sm:$0xff]
      %v701 = vld [vmem:[%s210 + $0x38] sm:$0xff]
      %v702 = vld [vmem:[%s210 + $0x40] sm:$0xff]
      %v703 = vld [vmem:[%s210 + $0x48] sm:$0xff]
      %v704 = vld [vmem:[%s210 + $0x50] sm:$0xff]
      %v705 = vld [vmem:[%s210 + $0x58] sm:$0xff]
      %v706 = vld [vmem:[%s210 + $0x60] sm:$0xff]
      %v707 = vld [vmem:[%s210 + $0x68] sm:$0xff]
      %v708 = vld [vmem:[%s210 + $0x70] sm:$0xff]
      %v709 = vld [vmem:[%s210 + $0x78] sm:$0xff]
      %v710 = vld [vmem:[%s210 + $0x80] sm:$0xff]
      %v711 = vld [vmem:[%s210 + $0x88] sm:$0xff]
      %v712 = vld [vmem:[%s210 + $0x90] sm:$0xff]
      %v713 = vmul.f32 %v675, %v494
      %v714 = vmul.f32 %v676, %v504
      %v715 = vmul.f32 %v677, %v514
      %v716 = vmul.f32 %v678, %v524
      %v717 = vmul.f32 %v679, %v534
      %v718 = vmul.f32 %v680, %v544
      %v719 = vmul.f32 %v681, %v554
      %v720 = vmul.f32 %v682, %v564
      %v721 = vmul.f32 %v683, %v574
      %v722 = vmul.f32 %v684, %v584
      %v723 = vmul.f32 %v685, %v594
      %v724 = vmul.f32 %v686, %v604
      %v725 = vmul.f32 %v687, %v614
      %v726 = vmul.f32 %v688, %v624
      %v727 = vmul.f32 %v689, %v634
      %v728 = vmul.f32 %v690, %v644
      %v729 = vmul.f32 %v691, %v654
      %v730 = vmul.f32 %v692, %v664
      %v731 = vmul.f32 %v693, %v674
      %v732 = vmul.f32 %v314, %v713
      %v733 = vmul.f32 %v315, %v714
      %v734 = vmul.f32 %v316, %v715
      %v735 = vmul.f32 %v317, %v716
      %v736 = vmul.f32 %v318, %v717
      %v737 = vmul.f32 %v319, %v718
      %v738 = vmul.f32 %v320, %v719
      %v739 = vmul.f32 %v321, %v720
      %v740 = vmul.f32 %v322, %v721
      %v741 = vmul.f32 %v323, %v722
      %v742 = vmul.f32 %v324, %v723
      %v743 = vmul.f32 %v325, %v724
      %v744 = vmul.f32 %v326, %v725
      %v745 = vmul.f32 %v327, %v726
      %v746 = vmul.f32 %v328, %v727
      %v747 = vmul.f32 %v329, %v728
      %v748 = vmul.f32 %v330, %v729
      %v749 = vmul.f32 %v331, %v730
      %v750 = vmul.f32 %v332, %v731
      %v751 = vsub.f32 %v694, %v732
      %v752 = vsub.f32 %v695, %v733
      %v753 = vsub.f32 %v696, %v734
      %v754 = vsub.f32 %v697, %v735
      %v755 = vsub.f32 %v698, %v736
      %v756 = vsub.f32 %v699, %v737
      %v757 = vsub.f32 %v700, %v738
      %v758 = vsub.f32 %v701, %v739
      %v759 = vsub.f32 %v702, %v740
      %v760 = vsub.f32 %v703, %v741
      %v761 = vsub.f32 %v704, %v742
      %v762 = vsub.f32 %v705, %v743
      %v763 = vsub.f32 %v706, %v744
      %v764 = vsub.f32 %v707, %v745
      %v765 = vsub.f32 %v708, %v746
      %v766 = vsub.f32 %v709, %v747
      %v767 = vsub.f32 %v710, %v748
      %v768 = vsub.f32 %v711, %v749
      %v769 = vsub.f32 %v712, %v750
      %771 = vset.pattern.permute.xlu0 0
      %772 = vperm.xlu0 %771, %v713
      %v773 = vpop.permute.xlu0 %772
      %776 = vset.pattern.permute.xlu0 0
      %777 = vperm.xlu0 %776, %v714
      %v778 = vpop.permute.xlu0 %777
      %781 = vset.pattern.permute.xlu0 0
      %782 = vperm.xlu0 %781, %v715
      %v783 = vpop.permute.xlu0 %782
      %786 = vset.pattern.permute.xlu0 0
      %787 = vperm.xlu0 %786, %v716
      %v788 = vpop.permute.xlu0 %787
      %791 = vset.pattern.permute.xlu0 0
      %792 = vperm.xlu0 %791, %v717
      %v793 = vpop.permute.xlu0 %792
      %796 = vset.pattern.permute.xlu0 0
      %797 = vperm.xlu0 %796, %v718
      %v798 = vpop.permute.xlu0 %797
      %801 = vset.pattern.permute.xlu0 0
      %802 = vperm.xlu0 %801, %v719
      %v803 = vpop.permute.xlu0 %802
      %806 = vset.pattern.permute.xlu0 0
      %807 = vperm.xlu0 %806, %v720
      %v808 = vpop.permute.xlu0 %807
      %811 = vset.pattern.permute.xlu0 0
      %812 = vperm.xlu0 %811, %v721
      %v813 = vpop.permute.xlu0 %812
      %816 = vset.pattern.permute.xlu0 0
      %817 = vperm.xlu0 %816, %v722
      %v818 = vpop.permute.xlu0 %817
      %821 = vset.pattern.permute.xlu0 0
      %822 = vperm.xlu0 %821, %v723
      %v823 = vpop.permute.xlu0 %822
      %826 = vset.pattern.permute.xlu0 0
      %827 = vperm.xlu0 %826, %v724
      %v828 = vpop.permute.xlu0 %827
      %831 = vset.pattern.permute.xlu0 0
      %832 = vperm.xlu0 %831, %v725
      %v833 = vpop.permute.xlu0 %832
      %836 = vset.pattern.permute.xlu0 0
      %837 = vperm.xlu0 %836, %v726
      %v838 = vpop.permute.xlu0 %837
      %841 = vset.pattern.permute.xlu0 0
      %842 = vperm.xlu0 %841, %v727
      %v843 = vpop.permute.xlu0 %842
      %846 = vset.pattern.permute.xlu0 0
      %847 = vperm.xlu0 %846, %v728
      %v848 = vpop.permute.xlu0 %847
      %851 = vset.pattern.permute.xlu0 0
      %852 = vperm.xlu0 %851, %v729
      %v853 = vpop.permute.xlu0 %852
      %856 = vset.pattern.permute.xlu0 0
      %857 = vperm.xlu0 %856, %v730
      %v858 = vpop.permute.xlu0 %857
      %861 = vset.pattern.permute.xlu0 0
      %862 = vperm.xlu0 %861, %v731
      %v863 = vpop.permute.xlu0 %862
      %v865 = vmul.f32 %v218, %v773
      %v866 = vmul.f32 %v219, %v778
      %v867 = vmul.f32 %v220, %v783
      %v868 = vmul.f32 %v221, %v788
      %v869 = vmul.f32 %v222, %v793
      %v870 = vmul.f32 %v223, %v798
      %v871 = vmul.f32 %v224, %v803
      %v872 = vmul.f32 %v225, %v808
      %v873 = vmul.f32 %v226, %v813
      %v874 = vmul.f32 %v227, %v818
      %v875 = vmul.f32 %v228, %v823
      %v876 = vmul.f32 %v229, %v828
      %v877 = vmul.f32 %v230, %v833
      %v878 = vmul.f32 %v231, %v838
      %v879 = vmul.f32 %v232, %v843
      %v880 = vmul.f32 %v233, %v848
      %v881 = vmul.f32 %v234, %v853
      %v882 = vmul.f32 %v235, %v858
      %v883 = vmul.f32 %v236, %v863
      %885 = vset.pattern.permute.xlu0 0
      %886 = vperm.xlu0 %885, %v751
      %v887 = vpop.permute.xlu0 %886
      %890 = vset.pattern.permute.xlu0 0
      %891 = vperm.xlu0 %890, %v752
      %v892 = vpop.permute.xlu0 %891
      %895 = vset.pattern.permute.xlu0 0
      %896 = vperm.xlu0 %895, %v753
      %v897 = vpop.permute.xlu0 %896
      %900 = vset.pattern.permute.xlu0 0
      %901 = vperm.xlu0 %900, %v754
      %v902 = vpop.permute.xlu0 %901
      %905 = vset.pattern.permute.xlu0 0
      %906 = vperm.xlu0 %905, %v755
      %v907 = vpop.permute.xlu0 %906
      %910 = vset.pattern.permute.xlu0 0
      %911 = vperm.xlu0 %910, %v756
      %v912 = vpop.permute.xlu0 %911
      %915 = vset.pattern.permute.xlu0 0
      %916 = vperm.xlu0 %915, %v757
      %v917 = vpop.permute.xlu0 %916
      %920 = vset.pattern.permute.xlu0 0
      %921 = vperm.xlu0 %920, %v758
      %v922 = vpop.permute.xlu0 %921
      %925 = vset.pattern.permute.xlu0 0
      %926 = vperm.xlu0 %925, %v759
      %v927 = vpop.permute.xlu0 %926
      %930 = vset.pattern.permute.xlu0 0
      %931 = vperm.xlu0 %930, %v760
      %v932 = vpop.permute.xlu0 %931
      %935 = vset.pattern.permute.xlu0 0
      %936 = vperm.xlu0 %935, %v761
      %v937 = vpop.permute.xlu0 %936
      %940 = vset.pattern.permute.xlu0 0
      %941 = vperm.xlu0 %940, %v762
      %v942 = vpop.permute.xlu0 %941
      %945 = vset.pattern.permute.xlu0 0
      %946 = vperm.xlu0 %945, %v763
      %v947 = vpop.permute.xlu0 %946
      %950 = vset.pattern.permute.xlu0 0
      %951 = vperm.xlu0 %950, %v764
      %v952 = vpop.permute.xlu0 %951
      %955 = vset.pattern.permute.xlu0 0
      %956 = vperm.xlu0 %955, %v765
      %v957 = vpop.permute.xlu0 %956
      %960 = vset.pattern.permute.xlu0 0
      %961 = vperm.xlu0 %960, %v766
      %v962 = vpop.permute.xlu0 %961
      %965 = vset.pattern.permute.xlu0 0
      %966 = vperm.xlu0 %965, %v767
      %v967 = vpop.permute.xlu0 %966
      %970 = vset.pattern.permute.xlu0 0
      %971 = vperm.xlu0 %970, %v768
      %v972 = vpop.permute.xlu0 %971
      %975 = vset.pattern.permute.xlu0 0
      %976 = vperm.xlu0 %975, %v769
      %v977 = vpop.permute.xlu0 %976
      %v979 = vadd.f32 %v865, %v887
      %v980 = vadd.f32 %v866, %v892
      %v981 = vadd.f32 %v867, %v897
      %v982 = vadd.f32 %v868, %v902
      %v983 = vadd.f32 %v869, %v907
      %v984 = vadd.f32 %v870, %v912
      %v985 = vadd.f32 %v871, %v917
      %v986 = vadd.f32 %v872, %v922
      %v987 = vadd.f32 %v873, %v927
      %v988 = vadd.f32 %v874, %v932
      %v989 = vadd.f32 %v875, %v937
      %v990 = vadd.f32 %v876, %v942
      %v991 = vadd.f32 %v877, %v947
      %v992 = vadd.f32 %v878, %v952
      %v993 = vadd.f32 %v879, %v957
      %v994 = vadd.f32 %v880, %v962
      %v995 = vadd.f32 %v881, %v967
      %v996 = vadd.f32 %v882, %v972
      %v997 = vadd.f32 %v883, %v977
      %998 = vst.msk [vmem:[%s216] sm:$0xff] %vm237, %v979
      %999 = vst.msk [vmem:[%s216 + $0x8] sm:$0xff] %vm237, %v980
      %1000 = vst.msk [vmem:[%s216 + $0x10] sm:$0xff] %vm237, %v981
      %1001 = vst.msk [vmem:[%s216 + $0x18] sm:$0xff] %vm237, %v982
      %1002 = vst.msk [vmem:[%s216 + $0x20] sm:$0xff] %vm237, %v983
      %1003 = vst.msk [vmem:[%s216 + $0x28] sm:$0xff] %vm237, %v984
      %1004 = vst.msk [vmem:[%s216 + $0x30] sm:$0xff] %vm237, %v985
      %1005 = vst.msk [vmem:[%s216 + $0x38] sm:$0xff] %vm237, %v986
      %1006 = vst.msk [vmem:[%s216 + $0x40] sm:$0xff] %vm237, %v987
      %1007 = vst.msk [vmem:[%s216 + $0x48] sm:$0xff] %vm237, %v988
      %1008 = vst.msk [vmem:[%s216 + $0x50] sm:$0xff] %vm237, %v989
      %1009 = vst.msk [vmem:[%s216 + $0x58] sm:$0xff] %vm237, %v990
      %1010 = vst.msk [vmem:[%s216 + $0x60] sm:$0xff] %vm237, %v991
      %1011 = vst.msk [vmem:[%s216 + $0x68] sm:$0xff] %vm237, %v992
      %1012 = vst.msk [vmem:[%s216 + $0x70] sm:$0xff] %vm237, %v993
      %1013 = vst.msk [vmem:[%s216 + $0x78] sm:$0xff] %vm237, %v994
      %1014 = vst.msk [vmem:[%s216 + $0x80] sm:$0xff] %vm237, %v995
      %1015 = vst.msk [vmem:[%s216 + $0x88] sm:$0xff] %vm237, %v996
      %1016 = vst.msk [vmem:[%s216 + $0x90] sm:$0xff] %vm237, %v997
      %s1017 = smul.u32 19, %s14
      %p1018 = scmp.lt.s32.totalorder %s1017, 37
      %s1019 = scalar_select %p1018, %s1017, 37
      %s1020 = smul.addr %s1019, 8
      %s1021 = scalar_lea.vmem %s3, %s1020
      // Predicated region
      $region33: #{tpu_custom_call.1} parent=31 // pred_check
        %p1022 = pneg %p110
      $region34: #{tpu_custom_call.1} parent=31 // pred_check_branch
        %1024 = sbr.rel (%p1022) target = $region36
      $region35: #{tpu_custom_call.1} parent=31 // pred_region
        %s1025 = smul.u32 19, %s14
      $region36: #{tpu_custom_call.1} parent=31 // pred_fallthru
        _
    $region32: #{tpu_custom_call.1} parent=5 // pred_fallthru
      _
    %p1026 = scmp.le.s32.totalorder 2, %s9
    // Predicated region
    $region37: #{tpu_custom_call.1} parent=5 // pred_check
      %p1027 = pneg %p1026
    $region38: #{tpu_custom_call.1} parent=5 // pred_check_branch
      %1029 = sbr.rel (%p1027) target = $region40
    $region39: #{tpu_custom_call.1} parent=5 // pred_region
      %s1030 = ssub.s32 %s9, 2
      // Predicated region
      $region41: #{tpu_custom_call.1} parent=39 // pred_check
        %p1031 = pneg %p116
      $region42: #{tpu_custom_call.1} parent=39 // pred_check_branch
        %1033 = sbr.rel (%p1031) target = $region44
      $region43: #{tpu_custom_call.1} parent=39 // pred_region
        %s1034 = smul.u32 19, %s15
        %p1035 = scmp.lt.s32.totalorder %s1034, 37
        %s1036 = scalar_select %p1035, %s1034, 37
        %s1037 = smul.addr %s1036, 8
        %s1038 = scalar_lea.vmem %s3, %s1037
      $region44: #{tpu_custom_call.1} parent=39 // pred_fallthru
        _
    $region40: #{tpu_custom_call.1} parent=5 // pred_fallthru
      _
  $region6: #{tpu_custom_call.1} parent=0 // loop_footer
    %s13 = sadd.s32 1, %s9
  $region7: #{tpu_custom_call.1} parent=0 // loop_footer_branch
    %8 = sbr.rel target = $region3
  $region8: #{tpu_custom_call.1} parent=0 // loop_exit
    _

</llo_original>
